<compile_context>
chip_gen: v7x
topology: tpu7x:2x2x1
jax: 0.10.0
libtpu: 0.0.40
codegen_flags: <defaults>
</compile_context>

<pallas_src>
import functools

import jax
import jax.numpy as jnp
from jax.experimental import pallas as pl
from jax.experimental.pallas import tpu as pltpu


# ---------------------------------------------------------------------------
# Kernel
# ---------------------------------------------------------------------------
def _envelope_kernel(x_ref, o_ref, *, p, a, b, c):
    x = x_ref[...]
    # 1/x via EUP reciprocal (exact mode keeps the 1e-5 rtol against the
    # float reference; approx=True + one Newton step is a v7x option).
    inv_x = pl.reciprocal(x, approx=False)
    # Horner form: a + b*x + c*x^2  ->  a + x*(b + c*x)   (fewer VALU ops)
    poly = a + x * (b + c * x)
    # x ** p with a Python int exponent lowers to integer_pow (repeated muls).
    env_val = inv_x + (x ** p) * poly
    # Ragged / padded lanes may hold garbage -> env_val can be inf there, but
    # those lanes are either masked on writeback or sliced off in the wrapper.
    o_ref[...] = jnp.where(x < 1.0, env_val, jnp.zeros_like(x))


# ---------------------------------------------------------------------------
# Tiling / layout heuristics
# ---------------------------------------------------------------------------
_FLAT_LANE = 2048                 # lane width for the flatten fallback path
_MAX_TILE_BYTES = 2 * 1024 * 1024 # <=2 MiB/block -> ~8 MiB double-buffered VMEM
_MIN_TILE_BYTES = 1 * 1024 * 1024 # keep DMAs big enough to hide ~0.35us/step
_TARGET_GRID_STEPS = 8            # >= ~4 blocks per TensorCore on dual-TC chips
_SMALL_INPUT_ELEMS = 1 << 18      # below this, fused XLA elementwise wins


def _choose_row_tile(rows, lane, itemsize):
    """Pick a row tile: multiple of the dtype sublane (or full extent),
    between ~1 MiB and ~2 MiB per block, aiming for >= 8 grid steps."""
    sublane = max(8, 32 // max(1, itemsize))   # f32: 8, bf16: 16, 8-bit: 32
    row_bytes = lane * itemsize
    max_rows = max(sublane, (_MAX_TILE_BYTES // row_bytes) // sublane * sublane)
    min_rows = -(-(_MIN_TILE_BYTES // row_bytes) // sublane) * sublane
    min_rows = max(sublane, min(min_rows, max_rows))

    if rows <= min_rows:
        return rows                      # single full-extent block
    tr = -(-rows // _TARGET_GRID_STEPS)  # ceil(rows / target_steps)
    tr = max(min_rows, min(tr, max_rows))
    if tr >= rows:
        return rows                      # full extent, single block
    return max(sublane, (tr // sublane) * sublane)


def _run_pallas_2d(x2d, p, a, b, c):
    rows, lane = x2d.shape
    tr = _choose_row_tile(rows, lane, jnp.dtype(x2d.dtype).itemsize)
    grid = (pl.cdiv(rows, tr),)          # ragged last block is masked by Pallas
    kernel = functools.partial(_envelope_kernel, p=p, a=a, b=b, c=c)
    return pl.pallas_call(
        kernel,
        out_shape=jax.ShapeDtypeStruct((rows, lane), x2d.dtype),
        grid=grid,
        in_specs=[pl.BlockSpec((tr, lane), lambda i: (i, 0))],
        out_specs=pl.BlockSpec((tr, lane), lambda i: (i, 0)),
        compiler_params=pltpu.CompilerParams(
            dimension_semantics=("parallel",)),
    )(x2d)


# ---------------------------------------------------------------------------
# Public entry point
# ---------------------------------------------------------------------------
def envelope(x, exponent, *, min_pallas_elements=_SMALL_INPUT_ELEMS):
    """Pallas TPU implementation of Envelope.forward for any input shape."""
    p = exponent
    a = -(p + 1) * (p + 2) / 2
    b = p * (p + 2)
    c = -p * (p + 1) / 2

    # Small-input bypass: per-step + wrapper overhead dominates tiny tensors.
    if x.size == 0 or x.size < min_pallas_elements:
        return envelope_ref(x, exponent)

    orig_shape = x.shape
    dtype = x.dtype
    itemsize = jnp.dtype(dtype).itemsize
    n = x.size
    sublane = max(8, 32 // max(1, itemsize))

    # Fast zero-copy path: last dim already lane-aligned (mult of 128) and a
    # minimal tile of it fits the VMEM budget -> no padding, no slicing.
    if x.ndim >= 2:
        last = orig_shape[-1]
        if last % 128 == 0 and last * itemsize * sublane <= _MAX_TILE_BYTES:
            rows = n // last
            out2d = _run_pallas_2d(x.reshape(rows, last), p, a, b, c)
            return out2d.reshape(orig_shape)

    # Fallback: flatten into a lane-dense [rows, 2048] slab.  Tail is padded
    # with a value > 1 so padded lanes produce exact zeros (no inf stored),
    # and the pad is sliced off afterwards.  Rows are never padded (ragged
    # last block handled by the grid mask).
    flat = x.reshape(-1)
    n_pad = (-n) % _FLAT_LANE
    if n_pad:
        flat = jnp.concatenate([flat, jnp.full((n_pad,), 2.0, dtype=dtype)])
    rows = flat.size // _FLAT_LANE
    out2d = _run_pallas_2d(flat.reshape(rows, _FLAT_LANE), p, a, b, c)
    out = out2d.reshape(-1)
    if n_pad:
        out = out[:n]
    return out.reshape(orig_shape)


def envelope_ref(x, exponent):
    """Pure-JAX reference matching the PyTorch module."""
    p = exponent
    a = -(p + 1) * (p + 2) / 2
    b = p * (p + 2)
    c = -p * (p + 1) / 2
    x_pow_p0 = x ** p
    x_pow_p1 = x_pow_p0 * x
    x_pow_p2 = x_pow_p1 * x
    env_val = 1.0 / x + a * x_pow_p0 + b * x_pow_p1 + c * x_pow_p2
    return jnp.where(x < 1.0, env_val, jnp.zeros_like(x))


# ---------------------------------------------------------------------------
# Self-test
# ---------------------------------------------------------------------------
if __name__ == "__main__":
    exponent = 5  # DimeNet default

    key = jax.random.PRNGKey(0)
    k1, k2, k3, k4 = jax.random.split(key, 4)

    # 1) Lane-aligned last dim (256) -> zero-copy 2-D path, single block.
    x1 = jax.random.uniform(k1, (16, 256), jnp.float32, minval=0.05, maxval=2.0)
    o1 = jax.block_until_ready(envelope(x1, exponent, min_pallas_elements=0))
    r1 = envelope_ref(x1, exponent)
    assert o1.shape == r1.shape and o1.dtype == r1.dtype
    assert jnp.allclose(o1, r1, rtol=1e-5, atol=1e-5)

    # 2) Lane-aligned, multi-block grid with a ragged last row-block
    #    (rows % tile_rows != 0 -> exercises masked writeback, no row pad).
    x2 = jax.random.uniform(k2, (1200, 640), jnp.float32, minval=0.05, maxval=2.0)
    o2 = jax.block_until_ready(envelope(x2, exponent, min_pallas_elements=0))
    r2 = envelope_ref(x2, exponent)
    assert o2.shape == r2.shape and o2.dtype == r2.dtype
    assert jnp.allclose(o2, r2, rtol=1e-5, atol=1e-5)

    # 3) Awkward shape (last dim not a multiple of 128) -> flatten + lane-pad path.
    x3 = jax.random.uniform(k3, (7, 100, 37), jnp.float32, minval=0.05, maxval=2.0)
    o3 = jax.block_until_ready(envelope(x3, exponent, min_pallas_elements=0))
    r3 = envelope_ref(x3, exponent)
    assert o3.shape == r3.shape and o3.dtype == r3.dtype
    assert jnp.allclose(o3, r3, rtol=1e-5, atol=1e-5)

    # 4) Tiny input with default threshold -> small-input XLA bypass.
    x4 = jax.random.uniform(k4, (8, 32), jnp.float32, minval=0.05, maxval=2.0)
    o4 = jax.block_until_ready(envelope(x4, exponent))
    r4 = envelope_ref(x4, exponent)
    assert jnp.allclose(o4, r4, rtol=1e-5, atol=1e-5)

    print("KERNEL_OK")
</pallas_src>

<mosaic_0001>
module attributes {stable_mosaic.version = 11 : i64} {
  func.func @_envelope_kernel(%arg0: i32, %arg1: memref<16x256xf32, #tpu.memory_space<vmem>>, %arg2: memref<16x256xf32, #tpu.memory_space<vmem>>) attributes {dimension_semantics = [#tpu.dimension_semantics<parallel>], iteration_bounds = array<i64: 1>, scalar_prefetch = 0 : i64, scratch_operands = 0 : i64, tpu.core_type = #tpu.core_type<tc>, window_params = [{transform_indices = @transform_0, window_bounds = array<i64: 16, 256>}, {transform_indices = @transform_1, window_bounds = array<i64: 16, 256>}]} {
    %c0 = arith.constant 0 : index
    %c0_0 = arith.constant 0 : index
    %0 = vector.load %arg1[%c0, %c0_0] : memref<16x256xf32, #tpu.memory_space<vmem>>, vector<16x256xf32>
    %1 = tpu.reciprocal %0 : vector<16x256xf32> -> vector<16x256xf32>
    %cst = arith.constant -1.500000e+01 : f32
    %2 = vector.broadcast %cst : f32 to vector<16x256xf32>
    %3 = arith.mulf %2, %0 : vector<16x256xf32>
    %cst_1 = arith.constant 3.500000e+01 : f32
    %4 = vector.broadcast %cst_1 : f32 to vector<16x256xf32>
    %5 = arith.addf %4, %3 : vector<16x256xf32>
    %6 = arith.mulf %0, %5 : vector<16x256xf32>
    %cst_2 = arith.constant -2.100000e+01 : f32
    %7 = vector.broadcast %cst_2 : f32 to vector<16x256xf32>
    %8 = arith.addf %7, %6 : vector<16x256xf32>
    %9 = arith.mulf %0, %0 : vector<16x256xf32>
    %10 = arith.mulf %9, %9 : vector<16x256xf32>
    %11 = arith.mulf %0, %10 : vector<16x256xf32>
    %12 = arith.mulf %11, %8 : vector<16x256xf32>
    %13 = arith.addf %1, %12 : vector<16x256xf32>
    %cst_3 = arith.constant 1.000000e+00 : f32
    %14 = vector.broadcast %cst_3 : f32 to vector<16x256xf32>
    %15 = arith.cmpf olt, %0, %14 : vector<16x256xf32>
    %cst_4 = arith.constant 0.000000e+00 : f32
    %16 = vector.broadcast %cst_4 : f32 to vector<16x256xf32>
    %17 = arith.select %15, %13, %16 : vector<16x256xi1>, vector<16x256xf32>
    %c0_5 = arith.constant 0 : index
    %c0_6 = arith.constant 0 : index
    %18 = vector.load %arg2[%c0_5, %c0_6] : memref<16x256xf32, #tpu.memory_space<vmem>>, vector<16x256xf32>
    tpu.vector_store %arg2[%c0_5, %c0_6], %17 {strides = array<i32>} : memref<16x256xf32, #tpu.memory_space<vmem>>, vector<16x256xf32>,
    return
  }
  func.func @transform_0(%arg0: i32) -> (i32, i32) {
    %c0_i32 = arith.constant 0 : i32
    %c0_i32_0 = arith.constant 0 : i32
    return %arg0, %c0_i32 : i32, i32
  }
  func.func @transform_1(%arg0: i32) -> (i32, i32) {
    %c0_i32 = arith.constant 0 : i32
    %c0_i32_0 = arith.constant 0 : i32
    return %arg0, %c0_i32 : i32, i32
  }
}

</mosaic_0001>

<llo_original>
// kernel: tpu_custom_call.1
$region0: #{tpu_custom_call.1}
  #allocation0 [shape = 'u32[]', space=smem, size = 0x4, offset = 0x4, fixed_abs, tag = 'smem constant byte address 0x4 - core index']
  #allocation1 [shape = 'u32[144,128]{1,0:T(1,128)}', space=vmem, size = 0x12000, scoped, tag = 'internal scratch']
  %s0 = inlined_call_operand.hbm [shape: f32[16,256], index: 0, kind: input, shape index: {}]
  %s1 = inlined_call_operand.hbm [shape: f32[16,256], index: 1, kind: output, shape index: {}]
  %s2 = sld [smem:[#allocation0]]
  $region18: #{tpu_custom_call.1} parent=0
    _
  %s4 = ssub.s32 1, %s2
  %s5 = scalar_select 0, %s4, %s2
  $region1: #{tpu_custom_call.1} parent=0
    #allocation2 [shape = 'u8[16384]{0}', space=vmem, size = 0x4000, scoped, tag = 'input window, operand 0, single buffered']
    #allocation3 [shape = 's32[1]{0}', space=sflag, size = 0x4, scoped, tag = 'scoped memory for tpu_custom_call.1']
    #allocation4 [shape = 's32[1]{0}', space=sflag, size = 0x4, scoped, tag = 'scoped memory for tpu_custom_call.1']
    #allocation5 [shape = 'u8[16384]{0}', space=vmem, size = 0x4000, scoped, tag = 'output window, operand 0, single buffered']
    %6 = vsyncpa [#allocation3], 0
    %7 = vsyncpa [#allocation4], 0
    // Predicated region
    $region2: #{tpu_custom_call.1} parent=1 // pred_check
      _
    $region3: #{tpu_custom_call.1} parent=1 // pred_check_branch
      %9 = sbr.rel (0) target = $region5
    $region4: #{tpu_custom_call.1} parent=1 // pred_region
      %s11 = ssub.s32 512, 512
      %12 = vsyncadd [#allocation3], %s11
      %s13 = sshll.u32 [#allocation2], 4
      %s14 = int_to_ptr.vmem [resolvable:$true] %s13
      %19 = dma.hbm_to_vmem [thread:$0]  %s0, 512, %s14, [#allocation3], 256, 256, 16
    $region5: #{tpu_custom_call.1} parent=1 // pred_fallthru
      _
    // Predicated region
    $region6: #{tpu_custom_call.1} parent=1 // pred_check
      _
    $region7: #{tpu_custom_call.1} parent=1 // pred_check_branch
      %21 = sbr.rel (0) target = $region9
    $region8: #{tpu_custom_call.1} parent=1 // pred_region
      %22 = dma.done [#allocation3], 512
    $region9: #{tpu_custom_call.1} parent=1 // pred_fallthru
      _
    %v23 = vld [vmem:[#allocation2] sm:$0xff]
    %v24 = vld [vmem:[#allocation2 + $0x8] sm:$0xff]
    %v25 = vld [vmem:[#allocation2 + $0x10] sm:$0xff]
    %v26 = vld [vmem:[#allocation2 + $0x18] sm:$0xff]
    %v27 = vrcp.pop %v23
    %v28 = vrcp.pop %v24
    %v29 = vrcp.pop %v25
    %v30 = vrcp.pop %v26
    %v31 = vmul.f32 %v23, -15.0
    %v32 = vmul.f32 %v24, -15.0
    %v33 = vmul.f32 %v25, -15.0
    %v34 = vmul.f32 %v26, -15.0
    %v35 = vadd.f32 %v31, 35.0
    %v36 = vadd.f32 %v32, 35.0
    %v37 = vadd.f32 %v33, 35.0
    %v38 = vadd.f32 %v34, 35.0
    %v39 = vmul.f32 %v23, %v35
    %v40 = vmul.f32 %v24, %v36
    %v41 = vmul.f32 %v25, %v37
    %v42 = vmul.f32 %v26, %v38
    %v43 = vadd.f32 %v39, -21.0
    %v44 = vadd.f32 %v40, -21.0
    %v45 = vadd.f32 %v41, -21.0
    %v46 = vadd.f32 %v42, -21.0
    %v47 = vmul.f32 %v23, %v23
    %v48 = vmul.f32 %v24, %v24
    %v49 = vmul.f32 %v25, %v25
    %v50 = vmul.f32 %v26, %v26
    %v51 = vmul.f32 %v47, %v47
    %v52 = vmul.f32 %v48, %v48
    %v53 = vmul.f32 %v49, %v49
    %v54 = vmul.f32 %v50, %v50
    %v55 = vmul.f32 %v23, %v51
    %v56 = vmul.f32 %v24, %v52
    %v57 = vmul.f32 %v25, %v53
    %v58 = vmul.f32 %v26, %v54
    %v59 = vmul.f32 %v55, %v43
    %v60 = vmul.f32 %v56, %v44
    %v61 = vmul.f32 %v57, %v45
    %v62 = vmul.f32 %v58, %v46
    %v63 = vadd.f32 %v27, %v59
    %v64 = vadd.f32 %v28, %v60
    %v65 = vadd.f32 %v29, %v61
    %v66 = vadd.f32 %v30, %v62
    %vm67 = vcmp.lt.f32.partialorder %v23, 1.0
    %vm68 = vcmp.lt.f32.partialorder %v24, 1.0
    %vm69 = vcmp.lt.f32.partialorder %v25, 1.0
    %vm70 = vcmp.lt.f32.partialorder %v26, 1.0
    %v71 = vsel %vm67, %v63, 0.0
    %v72 = vsel %vm68, %v64, 0.0
    %v73 = vsel %vm69, %v65, 0.0
    %v74 = vsel %vm70, %v66, 0.0
    %75 = vst [vmem:[#allocation5] sm:$0xff] %v71
    %76 = vst [vmem:[#allocation5 + $0x8] sm:$0xff] %v72
    %77 = vst [vmem:[#allocation5 + $0x10] sm:$0xff] %v73
    %78 = vst [vmem:[#allocation5 + $0x18] sm:$0xff] %v74
    // Predicated region
    $region10: #{tpu_custom_call.1} parent=1 // pred_check
      _
    $region11: #{tpu_custom_call.1} parent=1 // pred_check_branch
      %80 = sbr.rel (0) target = $region13
    $region12: #{tpu_custom_call.1} parent=1 // pred_region
      %s82 = ssub.s32 512, 512
      %83 = vsyncadd [#allocation4], %s82
      %s84 = sshll.u32 [#allocation5], 4
      %s85 = int_to_ptr.vmem [resolvable:$true] %s84
      %90 = dma.vmem_to_hbm [thread:$0]  %s85, 512, %s1, [#allocation4], 256, 256, 16
    $region13: #{tpu_custom_call.1} parent=1 // pred_fallthru
      _
    // Predicated region
    $region14: #{tpu_custom_call.1} parent=1 // pred_check
      _
    $region15: #{tpu_custom_call.1} parent=1 // pred_check_branch
      %92 = sbr.rel (0) target = $region17
    $region16: #{tpu_custom_call.1} parent=1 // pred_region
      %93 = dma.done [#allocation4], 512
    $region17: #{tpu_custom_call.1} parent=1 // pred_fallthru
      _
    %94 = vsyncpa [#allocation3], 1
    %95 = vsyncpa [#allocation4], 1

</llo_original>
